<compile_context>
chip_gen: v5e
topology: v5e:2x2
jax: 0.10.0
libtpu: 0.0.40
codegen_flags: <defaults>
</compile_context>

<pallas_src>
import jax
import jax.numpy as jnp
from jax.experimental import pallas as pl
from jax.experimental.pallas import tpu as pltpu


def _round_up(x: int, m: int) -> int:
    return ((x + m - 1) // m) * m


def _choose_out_pad(out_dim: int, n_out: int) -> int:
    """Lane-dense output width that is also a whole number of softmax groups."""
    pad = max(_round_up(out_dim, 128), 128)
    while pad % n_out != 0:      # keep groups whole so circular rolls stay group-aligned
        pad += 128
    return pad


def _make_actor_kernel(n_out: int, n_groups: int, compute_dtype):
    """n_groups = padded group count (out_pad // n_out)."""
    pow2 = (n_groups & (n_groups - 1)) == 0
    width = n_groups * n_out

    def group_reduce(x, op):
        # x: [tb, width], flat column c = i*n_out + o.  Returns same shape where every
        # lane holds the op-reduction over the n_groups members of its softmax group
        # (reduce over i), broadcast to all lanes.  Rolls run on the XLU slot.
        acc = x
        if pow2:
            shift = n_out
            while shift < width:
                acc = op(acc, pltpu.roll(acc, shift, axis=1))
                shift *= 2
        else:
            r = x
            for _ in range(n_groups - 1):
                r = pltpu.roll(r, n_out, axis=1)
                acc = op(acc, r)
        return acc

    def kernel(s_ref, w1_ref, b1_ref, w2_ref, b2_ref, w3_ref, b3_ref, out_ref):
        # ---- linear1 + ReLU ----
        x = s_ref[...].astype(compute_dtype)
        h = jnp.dot(x, w1_ref[...], preferred_element_type=jnp.float32) + b1_ref[...]
        h = jnp.maximum(h, 0.0)

        # ---- linear2 + ReLU ----
        h = jnp.dot(h.astype(compute_dtype), w2_ref[...],
                    preferred_element_type=jnp.float32) + b2_ref[...]
        h = jnp.maximum(h, 0.0)

        # ---- linear3 ----
        logits = jnp.dot(h.astype(compute_dtype), w3_ref[...],
                         preferred_element_type=jnp.float32) + b3_ref[...]

        # ---- grouped softmax over the N_in axis of the (B, N_in, N_out) view ----
        m = group_reduce(logits, jnp.maximum)       # per-group max, lane-broadcast
        e = jnp.exp(logits - m)                     # one full-width exp (EUP)
        d = group_reduce(e, jnp.add)                # per-group sum, lane-broadcast
        inv = pl.reciprocal(d, approx=True)         # EUP vrcp estimate
        inv = inv * (2.0 - d * inv)                 # one Newton step -> ~exact normalization
        out_ref[...] = (e * inv).astype(out_ref.dtype)   # single lane-dense store

    return kernel


def actor_forward(s, params, n_in: int, n_out: int, *,
                  block_batch: int = 512, compute_dtype=jnp.float32):
    """Run the Actor forward pass as one fused Pallas kernel.

    s: [B, input_size] float32
    params: w1 [D,H], b1 [1,H], w2 [H,H], b2 [1,H], w3 [H, n_in*n_out], b3 [1, n_in*n_out]
            (weights are [in, out], transposed vs. PyTorch)
    returns: [B, n_in*n_out] float32, softmax over the n_in groups.
    """
    B, D = s.shape
    w1, b1 = params["w1"], params["b1"]
    w2, b2 = params["w2"], params["b2"]
    w3, b3 = params["w3"], params["b3"]
    H = w1.shape[1]
    out_dim = n_in * n_out

    # Lane-dense padded output width (out_dim < 128 would otherwise lower to masked
    # partial stores).  Pad columns: zero weights + very negative bias -> exp() == 0,
    # so they never perturb the real softmax groups.
    out_pad = _choose_out_pad(out_dim, n_out)
    n_groups = out_pad // n_out
    if out_pad != out_dim:
        w3 = jnp.pad(w3, ((0, 0), (0, out_pad - out_dim)))
        b3 = jnp.pad(b3, ((0, 0), (0, out_pad - out_dim)), constant_values=-1e30)

    # Cast weights ONCE here (not per grid step inside the kernel); biases stay f32.
    w1 = w1.astype(compute_dtype)
    w2 = w2.astype(compute_dtype)
    w3 = w3.astype(compute_dtype)
    b1 = b1.astype(jnp.float32)
    b2 = b2.astype(jnp.float32)
    b3 = b3.astype(jnp.float32)

    # ---- batch tile: >= 2 grid steps when B allows (v7x megacore needs grid >= 2),
    # and within a conservative VMEM working budget (v5e scoped default is 16 MiB;
    # we raise the limit to 32 MiB below and keep the working set under 24 MiB).
    w_itemsize = jnp.dtype(compute_dtype).itemsize
    w_bytes = w_itemsize * (D * H + H * H + H * out_pad) + 4 * (2 * H + out_pad)

    def footprint(t):
        acts = 2 * 4 * t * (D + out_pad)        # double-buffered in/out activation tiles
        live = 4 * t * (2 * H + 3 * out_pad)    # h / logits / e / reduction slabs
        return acts + live + w_bytes

    tb = min(block_batch, _round_up(max(pl.cdiv(B, 2), 1), 8))
    tb = max(8, _round_up(tb, 8))
    budget = 24 * 1024 * 1024
    while tb > 8 and footprint(tb) > budget:
        tb = max(8, _round_up(tb // 2, 8))
    grid = (pl.cdiv(B, tb),)

    kernel = _make_actor_kernel(n_out, n_groups, compute_dtype)

    cost = pl.CostEstimate(
        flops=2 * B * (D * H + H * H + H * out_pad),
        transcendentals=B * out_pad,
        bytes_accessed=4 * B * (D + out_pad) + w_bytes)

    def build(single_buffer_weights: bool):
        def act_spec(feat):
            return pl.BlockSpec((tb, feat), lambda i: (i, 0))

        def resident(shape):
            # constant index_map -> block loaded into VMEM once, stays resident
            ndim = len(shape)

            def idx(i):
                return (0,) * ndim

            if single_buffer_weights:
                # invariant block: second pipeline buffer is pure VMEM waste
                return pl.BlockSpec(shape, idx, pipeline_mode=pl.Buffered(1))
            return pl.BlockSpec(shape, idx)

        return pl.pallas_call(
            kernel,
            out_shape=jax.ShapeDtypeStruct((B, out_pad), jnp.float32),
            grid=grid,
            in_specs=[
                act_spec(D),
                resident(w1.shape), resident(b1.shape),
                resident(w2.shape), resident(b2.shape),
                resident(w3.shape), resident(b3.shape),
            ],
            out_specs=act_spec(out_pad),
            compiler_params=pltpu.CompilerParams(
                dimension_semantics=("parallel",),
                vmem_limit_bytes=32 * 1024 * 1024),
            cost_estimate=cost,
        )

    try:
        out = build(True)(s, w1, b1, w2, b2, w3, b3)
    except Exception:
        # pipeline_mode=pl.Buffered(1) not supported by this jax version:
        # fall back to default double-buffering (identical results).
        out = build(False)(s, w1, b1, w2, b2, w3, b3)

    if out_pad != out_dim:
        out = out[:, :out_dim]
    return out


def init_actor_params(key, input_size, hidden_size, n_in, n_out):
    """Deterministic synthetic parameters (shapes match the nn.Linear layers)."""
    k1, k2, k3, k4, k5, k6 = jax.random.split(key, 6)
    out_dim = n_in * n_out
    scale1 = 1.0 / jnp.sqrt(input_size)
    scale2 = 1.0 / jnp.sqrt(hidden_size)
    return {
        # stored as [in, out] (transposed vs. PyTorch's [out, in])
        "w1": jax.random.uniform(k1, (input_size, hidden_size), jnp.float32, -scale1, scale1),
        "b1": jax.random.uniform(k2, (1, hidden_size), jnp.float32, -scale1, scale1),
        "w2": jax.random.uniform(k3, (hidden_size, hidden_size), jnp.float32, -scale2, scale2),
        "b2": jax.random.uniform(k4, (1, hidden_size), jnp.float32, -scale2, scale2),
        "w3": jax.random.uniform(k5, (hidden_size, out_dim), jnp.float32, -scale2, scale2),
        "b3": jax.random.uniform(k6, (1, out_dim), jnp.float32, -scale2, scale2),
    }


def actor_reference(s, params, n_in, n_out):
    """Pure-JAX reference for validation."""
    x = jnp.maximum(s @ params["w1"] + params["b1"], 0.0)
    x = jnp.maximum(x @ params["w2"] + params["b2"], 0.0)
    x = x @ params["w3"] + params["b3"]
    x = x.reshape(-1, n_in, n_out)
    x = jax.nn.softmax(x, axis=1)
    return x.reshape(-1, n_in * n_out)


if __name__ == "__main__":
    # Small shapes consistent with the module's forward.
    B = 2
    INPUT_SIZE = 16
    HIDDEN_SIZE = 32
    N_IN = 4
    N_OUT = 8

    key = jax.random.PRNGKey(0)
    k_params, k_s = jax.random.split(key)

    params = init_actor_params(k_params, INPUT_SIZE, HIDDEN_SIZE, N_IN, N_OUT)
    s = jax.random.normal(k_s, (B, INPUT_SIZE), jnp.float32)

    ref = actor_reference(s, params, N_IN, N_OUT)

    # f32 compute path (default): tight check against the pure-JAX reference.
    out = jax.block_until_ready(actor_forward(s, params, N_IN, N_OUT))
    assert out.shape == (B, N_IN * N_OUT)
    assert jnp.allclose(out, ref, atol=1e-4, rtol=1e-4), "f32 mismatch vs reference"
    assert jnp.allclose(out.reshape(B, N_IN, N_OUT).sum(axis=1), 1.0, atol=1e-3)

    # bf16 compute path (production setting for v6e/v7x MXU): looser check.
    out_bf16 = jax.block_until_ready(
        actor_forward(s, params, N_IN, N_OUT, compute_dtype=jnp.bfloat16))
    assert out_bf16.shape == (B, N_IN * N_OUT)
    assert jnp.allclose(out_bf16, ref, atol=5e-2, rtol=5e-2), "bf16 mismatch vs reference"
    assert jnp.allclose(out_bf16.reshape(B, N_IN, N_OUT).sum(axis=1), 1.0, atol=2e-2)

    print("KERNEL_OK")
</pallas_src>

<mosaic_0001>
module attributes {stable_mosaic.version = 11 : i64} {
  func.func @kernel(%arg0: i32, %arg1: memref<8x16xf32, #tpu.memory_space<vmem>>, %arg2: memref<16x32xf32, #tpu.memory_space<vmem>>, %arg3: memref<1x32xf32, #tpu.memory_space<vmem>>, %arg4: memref<32x32xf32, #tpu.memory_space<vmem>>, %arg5: memref<1x32xf32, #tpu.memory_space<vmem>>, %arg6: memref<32x128xf32, #tpu.memory_space<vmem>>, %arg7: memref<1x128xf32, #tpu.memory_space<vmem>>, %arg8: memref<8x128xf32, #tpu.memory_space<vmem>>) attributes {dimension_semantics = [#tpu.dimension_semantics<parallel>], iteration_bounds = array<i64: 1>, scalar_prefetch = 0 : i64, scratch_operands = 0 : i64, tpu.core_type = #tpu.core_type<tc>, window_params = [{transform_indices = @transform_0, window_bounds = array<i64: 8, 16>}, {pipeline_mode = #tpu.pipeline_mode<synchronous>, transform_indices = @transform_1, window_bounds = array<i64: 16, 32>}, {pipeline_mode = #tpu.pipeline_mode<synchronous>, transform_indices = @transform_2, window_bounds = array<i64: 1, 32>}, {pipeline_mode = #tpu.pipeline_mode<synchronous>, transform_indices = @transform_3, window_bounds = array<i64: 32, 32>}, {pipeline_mode = #tpu.pipeline_mode<synchronous>, transform_indices = @transform_4, window_bounds = array<i64: 1, 32>}, {pipeline_mode = #tpu.pipeline_mode<synchronous>, transform_indices = @transform_5, window_bounds = array<i64: 32, 128>}, {pipeline_mode = #tpu.pipeline_mode<synchronous>, transform_indices = @transform_6, window_bounds = array<i64: 1, 128>}, {transform_indices = @transform_7, window_bounds = array<i64: 8, 128>}]} {
    %c0 = arith.constant 0 : index
    %c0_0 = arith.constant 0 : index
    %0 = vector.load %arg1[%c0, %c0_0] : memref<8x16xf32, #tpu.memory_space<vmem>>, vector<8x16xf32>
    %c0_1 = arith.constant 0 : index
    %c0_2 = arith.constant 0 : index
    %1 = vector.load %arg2[%c0_1, %c0_2] : memref<16x32xf32, #tpu.memory_space<vmem>>, vector<16x32xf32>
    %cst = arith.constant dense<0.000000e+00> : vector<8x32xf32>
    %2 = tpu.matmul %0, %1, %cst {dimension_numbers = #tpu.dot_dimension_numbers<[1], [0], [0], [1], [0, 0, 1, 1], [], []>} : vector<8x16xf32>, vector<16x32xf32>, vector<8x32xf32> -> vector<8x32xf32>
    %c0_3 = arith.constant 0 : index
    %c0_4 = arith.constant 0 : index
    %3 = vector.load %arg3[%c0_3, %c0_4] : memref<1x32xf32, #tpu.memory_space<vmem>>, vector<1x32xf32>
    %4 = vector.broadcast %3 : vector<1x32xf32> to vector<8x32xf32>
    %5 = arith.addf %2, %4 : vector<8x32xf32>
    %cst_5 = arith.constant 0.000000e+00 : f32
    %6 = vector.broadcast %cst_5 : f32 to vector<8x32xf32>
    %7 = arith.maximumf %5, %6 : vector<8x32xf32>
    %c0_6 = arith.constant 0 : index
    %c0_7 = arith.constant 0 : index
    %8 = vector.load %arg4[%c0_6, %c0_7] : memref<32x32xf32, #tpu.memory_space<vmem>>, vector<32x32xf32>
    %cst_8 = arith.constant dense<0.000000e+00> : vector<8x32xf32>
    %9 = tpu.matmul %7, %8, %cst_8 {dimension_numbers = #tpu.dot_dimension_numbers<[1], [0], [0], [1], [0, 0, 1, 1], [], []>} : vector<8x32xf32>, vector<32x32xf32>, vector<8x32xf32> -> vector<8x32xf32>
    %c0_9 = arith.constant 0 : index
    %c0_10 = arith.constant 0 : index
    %10 = vector.load %arg5[%c0_9, %c0_10] : memref<1x32xf32, #tpu.memory_space<vmem>>, vector<1x32xf32>
    %11 = vector.broadcast %10 : vector<1x32xf32> to vector<8x32xf32>
    %12 = arith.addf %9, %11 : vector<8x32xf32>
    %cst_11 = arith.constant 0.000000e+00 : f32
    %13 = vector.broadcast %cst_11 : f32 to vector<8x32xf32>
    %14 = arith.maximumf %12, %13 : vector<8x32xf32>
    %c0_12 = arith.constant 0 : index
    %c0_13 = arith.constant 0 : index
    %15 = vector.load %arg6[%c0_12, %c0_13] : memref<32x128xf32, #tpu.memory_space<vmem>>, vector<32x128xf32>
    %cst_14 = arith.constant dense<0.000000e+00> : vector<8x128xf32>
    %16 = tpu.matmul %14, %15, %cst_14 {dimension_numbers = #tpu.dot_dimension_numbers<[1], [0], [0], [1], [0, 0, 1, 1], [], []>} : vector<8x32xf32>, vector<32x128xf32>, vector<8x128xf32> -> vector<8x128xf32>
    %c0_15 = arith.constant 0 : index
    %c0_16 = arith.constant 0 : index
    %17 = vector.load %arg7[%c0_15, %c0_16] : memref<1x128xf32, #tpu.memory_space<vmem>>, vector<1x128xf32>
    %18 = vector.broadcast %17 : vector<1x128xf32> to vector<8x128xf32>
    %19 = arith.addf %16, %18 : vector<8x128xf32>
    %c8_i32 = arith.constant 8 : i32
    %20 = tpu.dynamic_rotate %19 by %c8_i32 dim 1 : vector<8x128xf32>, i32 -> vector<8x128xf32>
    %21 = arith.maximumf %19, %20 : vector<8x128xf32>
    %c16_i32 = arith.constant 16 : i32
    %22 = tpu.dynamic_rotate %21 by %c16_i32 dim 1 : vector<8x128xf32>, i32 -> vector<8x128xf32>
    %23 = arith.maximumf %21, %22 : vector<8x128xf32>
    %c32_i32 = arith.constant 32 : i32
    %24 = tpu.dynamic_rotate %23 by %c32_i32 dim 1 : vector<8x128xf32>, i32 -> vector<8x128xf32>
    %25 = arith.maximumf %23, %24 : vector<8x128xf32>
    %c64_i32 = arith.constant 64 : i32
    %26 = tpu.dynamic_rotate %25 by %c64_i32 dim 1 : vector<8x128xf32>, i32 -> vector<8x128xf32>
    %27 = arith.maximumf %25, %26 : vector<8x128xf32>
    %28 = arith.subf %19, %27 : vector<8x128xf32>
    %29 = math.exp %28 : vector<8x128xf32>
    %c8_i32_17 = arith.constant 8 : i32
    %30 = tpu.dynamic_rotate %29 by %c8_i32_17 dim 1 : vector<8x128xf32>, i32 -> vector<8x128xf32>
    %31 = arith.addf %29, %30 : vector<8x128xf32>
    %c16_i32_18 = arith.constant 16 : i32
    %32 = tpu.dynamic_rotate %31 by %c16_i32_18 dim 1 : vector<8x128xf32>, i32 -> vector<8x128xf32>
    %33 = arith.addf %31, %32 : vector<8x128xf32>
    %c32_i32_19 = arith.constant 32 : i32
    %34 = tpu.dynamic_rotate %33 by %c32_i32_19 dim 1 : vector<8x128xf32>, i32 -> vector<8x128xf32>
    %35 = arith.addf %33, %34 : vector<8x128xf32>
    %c64_i32_20 = arith.constant 64 : i32
    %36 = tpu.dynamic_rotate %35 by %c64_i32_20 dim 1 : vector<8x128xf32>, i32 -> vector<8x128xf32>
    %37 = arith.addf %35, %36 : vector<8x128xf32>
    %38 = tpu.reciprocal %37 {approx = true} : vector<8x128xf32> -> vector<8x128xf32>
    %39 = arith.mulf %37, %38 : vector<8x128xf32>
    %cst_21 = arith.constant 2.000000e+00 : f32
    %40 = vector.broadcast %cst_21 : f32 to vector<8x128xf32>
    %41 = arith.subf %40, %39 : vector<8x128xf32>
    %42 = arith.mulf %38, %41 : vector<8x128xf32>
    %43 = arith.mulf %29, %42 : vector<8x128xf32>
    %c0_22 = arith.constant 0 : index
    %c0_23 = arith.constant 0 : index
    %44 = vector.load %arg8[%c0_22, %c0_23] : memref<8x128xf32, #tpu.memory_space<vmem>>, vector<8x128xf32>
    tpu.vector_store %arg8[%c0_22, %c0_23], %43 {strides = array<i32>} : memref<8x128xf32, #tpu.memory_space<vmem>>, vector<8x128xf32>,
    return
  }
  func.func @transform_0(%arg0: i32) -> (i32, i32) {
    %c0_i32 = arith.constant 0 : i32
    %c0_i32_0 = arith.constant 0 : i32
    return %arg0, %c0_i32 : i32, i32
  }
  func.func @transform_1(%arg0: i32) -> (i32, i32) {
    %c0_i32 = arith.constant 0 : i32
    %c0_i32_0 = arith.constant 0 : i32
    %c0_i32_1 = arith.constant 0 : i32
    return %c0_i32, %c0_i32_0 : i32, i32
  }
  func.func @transform_2(%arg0: i32) -> (i32, i32) {
    %c0_i32 = arith.constant 0 : i32
    %c0_i32_0 = arith.constant 0 : i32
    %c0_i32_1 = arith.constant 0 : i32
    return %c0_i32, %c0_i32_0 : i32, i32
  }
  func.func @transform_3(%arg0: i32) -> (i32, i32) {
    %c0_i32 = arith.constant 0 : i32
    %c0_i32_0 = arith.constant 0 : i32
    %c0_i32_1 = arith.constant 0 : i32
    return %c0_i32, %c0_i32_0 : i32, i32
  }
  func.func @transform_4(%arg0: i32) -> (i32, i32) {
    %c0_i32 = arith.constant 0 : i32
    %c0_i32_0 = arith.constant 0 : i32
    %c0_i32_1 = arith.constant 0 : i32
    return %c0_i32, %c0_i32_0 : i32, i32
  }
  func.func @transform_5(%arg0: i32) -> (i32, i32) {
    %c0_i32 = arith.constant 0 : i32
    %c0_i32_0 = arith.constant 0 : i32
    %c0_i32_1 = arith.constant 0 : i32
    return %c0_i32, %c0_i32_0 : i32, i32
  }
  func.func @transform_6(%arg0: i32) -> (i32, i32) {
    %c0_i32 = arith.constant 0 : i32
    %c0_i32_0 = arith.constant 0 : i32
    %c0_i32_1 = arith.constant 0 : i32
    return %c0_i32, %c0_i32_0 : i32, i32
  }
  func.func @transform_7(%arg0: i32) -> (i32, i32) {
    %c0_i32 = arith.constant 0 : i32
    %c0_i32_0 = arith.constant 0 : i32
    return %arg0, %c0_i32 : i32, i32
  }
}

module attributes {stable_mosaic.version = 11 : i64} {
  func.func @kernel(%arg0: i32, %arg1: memref<8x16xf32, #tpu.memory_space<vmem>>, %arg2: memref<16x32xf32, #tpu.memory_space<vmem>>, %arg3: memref<1x32xf32, #tpu.memory_space<vmem>>, %arg4: memref<32x32xf32, #tpu.memory_space<vmem>>, %arg5: memref<1x32xf32, #tpu.memory_space<vmem>>, %arg6: memref<32x128xf32, #tpu.memory_space<vmem>>, %arg7: memref<1x128xf32, #tpu.memory_space<vmem>>, %arg8: memref<8x128xf32, #tpu.memory_space<vmem>>) attributes {dimension_semantics = [#tpu.dimension_semantics<parallel>], iteration_bounds = array<i64: 1>, scalar_prefetch = 0 : i64, scratch_operands = 0 : i64, tpu.core_type = #tpu.core_type<tc>, window_params = [{transform_indices = @transform_0, window_bounds = array<i64: 8, 16>}, {pipeline_mode = #tpu.pipeline_mode<synchronous>, transform_indices = @transform_1, window_bounds = array<i64: 16, 32>}, {pipeline_mode = #tpu.pipeline_mode<synchronous>, transform_indices = @transform_2, window_bounds = array<i64: 1, 32>}, {pipeline_mode = #tpu.pipeline_mode<synchronous>, transform_indices = @transform_3, window_bounds = array<i64: 32, 32>}, {pipeline_mode = #tpu.pipeline_mode<synchronous>, transform_indices = @transform_4, window_bounds = array<i64: 1, 32>}, {pipeline_mode = #tpu.pipeline_mode<synchronous>, transform_indices = @transform_5, window_bounds = array<i64: 32, 128>}, {pipeline_mode = #tpu.pipeline_mode<synchronous>, transform_indices = @transform_6, window_bounds = array<i64: 1, 128>}, {transform_indices = @transform_7, window_bounds = array<i64: 8, 128>}]} {
    %c0 = arith.constant 0 : index
    %c0_0 = arith.constant 0 : index
    %0 = vector.load %arg1[%c0, %c0_0] : memref<8x16xf32, #tpu.memory_space<vmem>>, vector<8x16xf32>
    %c0_1 = arith.constant 0 : index
    %c0_2 = arith.constant 0 : index
    %1 = vector.load %arg2[%c0_1, %c0_2] : memref<16x32xf32, #tpu.memory_space<vmem>>, vector<16x32xf32>
    %cst = arith.constant dense<0.000000e+00> : vector<8x32xf32>
    %2 = tpu.matmul %0, %1, %cst {dimension_numbers = #tpu.dot_dimension_numbers<[1], [0], [0], [1], [0, 0, 1, 1], [], []>} : vector<8x16xf32>, vector<16x32xf32>, vector<8x32xf32> -> vector<8x32xf32>
    %c0_3 = arith.constant 0 : index
    %c0_4 = arith.constant 0 : index
    %3 = vector.load %arg3[%c0_3, %c0_4] : memref<1x32xf32, #tpu.memory_space<vmem>>, vector<1x32xf32>
    %4 = vector.broadcast %3 : vector<1x32xf32> to vector<8x32xf32>
    %5 = arith.addf %2, %4 : vector<8x32xf32>
    %cst_5 = arith.constant 0.000000e+00 : f32
    %6 = vector.broadcast %cst_5 : f32 to vector<8x32xf32>
    %7 = arith.maximumf %5, %6 : vector<8x32xf32>
    %c0_6 = arith.constant 0 : index
    %c0_7 = arith.constant 0 : index
    %8 = vector.load %arg4[%c0_6, %c0_7] : memref<32x32xf32, #tpu.memory_space<vmem>>, vector<32x32xf32>
    %cst_8 = arith.constant dense<0.000000e+00> : vector<8x32xf32>
    %9 = tpu.matmul %7, %8, %cst_8 {dimension_numbers = #tpu.dot_dimension_numbers<[1], [0], [0], [1], [0, 0, 1, 1], [], []>} : vector<8x32xf32>, vector<32x32xf32>, vector<8x32xf32> -> vector<8x32xf32>
    %c0_9 = arith.constant 0 : index
    %c0_10 = arith.constant 0 : index
    %10 = vector.load %arg5[%c0_9, %c0_10] : memref<1x32xf32, #tpu.memory_space<vmem>>, vector<1x32xf32>
    %11 = vector.broadcast %10 : vector<1x32xf32> to vector<8x32xf32>
    %12 = arith.addf %9, %11 : vector<8x32xf32>
    %cst_11 = arith.constant 0.000000e+00 : f32
    %13 = vector.broadcast %cst_11 : f32 to vector<8x32xf32>
    %14 = arith.maximumf %12, %13 : vector<8x32xf32>
    %c0_12 = arith.constant 0 : index
    %c0_13 = arith.constant 0 : index
    %15 = vector.load %arg6[%c0_12, %c0_13] : memref<32x128xf32, #tpu.memory_space<vmem>>, vector<32x128xf32>
    %cst_14 = arith.constant dense<0.000000e+00> : vector<8x128xf32>
    %16 = tpu.matmul %14, %15, %cst_14 {dimension_numbers = #tpu.dot_dimension_numbers<[1], [0], [0], [1], [0, 0, 1, 1], [], []>} : vector<8x32xf32>, vector<32x128xf32>, vector<8x128xf32> -> vector<8x128xf32>
    %c0_15 = arith.constant 0 : index
    %c0_16 = arith.constant 0 : index
    %17 = vector.load %arg7[%c0_15, %c0_16] : memref<1x128xf32, #tpu.memory_space<vmem>>, vector<1x128xf32>
    %18 = vector.broadcast %17 : vector<1x128xf32> to vector<8x128xf32>
    %19 = arith.addf %16, %18 : vector<8x128xf32>
    %c8_i32 = arith.constant 8 : i32
    %20 = tpu.dynamic_rotate %19 by %c8_i32 dim 1 : vector<8x128xf32>, i32 -> vector<8x128xf32>
    %21 = arith.maximumf %19, %20 : vector<8x128xf32>
    %c16_i32 = arith.constant 16 : i32
    %22 = tpu.dynamic_rotate %21 by %c16_i32 dim 1 : vector<8x128xf32>, i32 -> vector<8x128xf32>
    %23 = arith.maximumf %21, %22 : vector<8x128xf32>
    %c32_i32 = arith.constant 32 : i32
    %24 = tpu.dynamic_rotate %23 by %c32_i32 dim 1 : vector<8x128xf32>, i32 -> vector<8x128xf32>
    %25 = arith.maximumf %23, %24 : vector<8x128xf32>
    %c64_i32 = arith.constant 64 : i32
    %26 = tpu.dynamic_rotate %25 by %c64_i32 dim 1 : vector<8x128xf32>, i32 -> vector<8x128xf32>
    %27 = arith.maximumf %25, %26 : vector<8x128xf32>
    %28 = arith.subf %19, %27 : vector<8x128xf32>
    %29 = math.exp %28 : vector<8x128xf32>
    %c8_i32_17 = arith.constant 8 : i32
    %30 = tpu.dynamic_rotate %29 by %c8_i32_17 dim 1 : vector<8x128xf32>, i32 -> vector<8x128xf32>
    %31 = arith.addf %29, %30 : vector<8x128xf32>
    %c16_i32_18 = arith.constant 16 : i32
    %32 = tpu.dynamic_rotate %31 by %c16_i32_18 dim 1 : vector<8x128xf32>, i32 -> vector<8x128xf32>
    %33 = arith.addf %31, %32 : vector<8x128xf32>
    %c32_i32_19 = arith.constant 32 : i32
    %34 = tpu.dynamic_rotate %33 by %c32_i32_19 dim 1 : vector<8x128xf32>, i32 -> vector<8x128xf32>
    %35 = arith.addf %33, %34 : vector<8x128xf32>
    %c64_i32_20 = arith.constant 64 : i32
    %36 = tpu.dynamic_rotate %35 by %c64_i32_20 dim 1 : vector<8x128xf32>, i32 -> vector<8x128xf32>
    %37 = arith.addf %35, %36 : vector<8x128xf32>
    %38 = tpu.reciprocal %37 {approx = true} : vector<8x128xf32> -> vector<8x128xf32>
    %39 = arith.mulf %37, %38 : vector<8x128xf32>
    %cst_21 = arith.constant 2.000000e+00 : f32
    %40 = vector.broadcast %cst_21 : f32 to vector<8x128xf32>
    %41 = arith.subf %40, %39 : vector<8x128xf32>
    %42 = arith.mulf %38, %41 : vector<8x128xf32>
    %43 = arith.mulf %29, %42 : vector<8x128xf32>
    %c0_22 = arith.constant 0 : index
    %c0_23 = arith.constant 0 : index
    %44 = vector.load %arg8[%c0_22, %c0_23] : memref<8x128xf32, #tpu.memory_space<vmem>>, vector<8x128xf32>
    tpu.vector_store %arg8[%c0_22, %c0_23], %43 {strides = array<i32>} : memref<8x128xf32, #tpu.memory_space<vmem>>, vector<8x128xf32>,
    return
  }
  func.func @transform_0(%arg0: i32) -> (i32, i32) {
    %c0_i32 = arith.constant 0 : i32
    %c0_i32_0 = arith.constant 0 : i32
    return %arg0, %c0_i32 : i32, i32
  }
  func.func @transform_1(%arg0: i32) -> (i32, i32) {
    %c0_i32 = arith.constant 0 : i32
    %c0_i32_0 = arith.constant 0 : i32
    %c0_i32_1 = arith.constant 0 : i32
    return %c0_i32, %c0_i32_0 : i32, i32
  }
  func.func @transform_2(%arg0: i32) -> (i32, i32) {
    %c0_i32 = arith.constant 0 : i32
    %c0_i32_0 = arith.constant 0 : i32
    %c0_i32_1 = arith.constant 0 : i32
    return %c0_i32, %c0_i32_0 : i32, i32
  }
  func.func @transform_3(%arg0: i32) -> (i32, i32) {
    %c0_i32 = arith.constant 0 : i32
    %c0_i32_0 = arith.constant 0 : i32
    %c0_i32_1 = arith.constant 0 : i32
    return %c0_i32, %c0_i32_0 : i32, i32
  }
  func.func @transform_4(%arg0: i32) -> (i32, i32) {
    %c0_i32 = arith.constant 0 : i32
    %c0_i32_0 = arith.constant 0 : i32
    %c0_i32_1 = arith.constant 0 : i32
    return %c0_i32, %c0_i32_0 : i32, i32
  }
  func.func @transform_5(%arg0: i32) -> (i32, i32) {
    %c0_i32 = arith.constant 0 : i32
    %c0_i32_0 = arith.constant 0 : i32
    %c0_i32_1 = arith.constant 0 : i32
    return %c0_i32, %c0_i32_0 : i32, i32
  }
  func.func @transform_6(%arg0: i32) -> (i32, i32) {
    %c0_i32 = arith.constant 0 : i32
    %c0_i32_0 = arith.constant 0 : i32
    %c0_i32_1 = arith.constant 0 : i32
    return %c0_i32, %c0_i32_0 : i32, i32
  }
  func.func @transform_7(%arg0: i32) -> (i32, i32) {
    %c0_i32 = arith.constant 0 : i32
    %c0_i32_0 = arith.constant 0 : i32
    return %arg0, %c0_i32 : i32, i32
  }
}

</mosaic_0001>

<llo_original>
// kernel: tpu_custom_call.1
$region0: #{tpu_custom_call.1}
  #allocation0 [shape = 'u32[]', space=smem, size = 0x4, offset = 0x4, fixed_abs, tag = 'smem constant byte address 0x4 - core index']
  #allocation1 [shape = 'u32[72,128]{1,0:T(1,128)}', space=vmem, size = 0x9000, scoped, tag = 'internal scratch']
  %s0 = inlined_call_operand.hbm [shape: f32[2,16], index: 0, kind: input, shape index: {}]
  %s1 = inlined_call_operand.hbm [shape: f32[16,32], index: 1, kind: input, shape index: {}]
  %s2 = inlined_call_operand.vmem [shape: f32[1,32], index: 2, kind: input, shape index: {}]
  %s3 = inlined_call_operand.hbm [shape: f32[32,32], index: 3, kind: input, shape index: {}]
  %s4 = inlined_call_operand.vmem [shape: f32[1,32], index: 4, kind: input, shape index: {}]
  %s5 = inlined_call_operand.hbm [shape: f32[32,128], index: 5, kind: input, shape index: {}]
  %s6 = inlined_call_operand.vmem [shape: f32[1,128], index: 6, kind: input, shape index: {}]
  %s7 = inlined_call_operand.hbm [shape: f32[2,128], index: 7, kind: output, shape index: {}]
  %s8 = sld [smem:[#allocation0]]
  $region54: #{tpu_custom_call.1} parent=0
    _
  %s10 = ssub.s32 1, %s8
  %s11 = scalar_select 0, %s10, %s8
  $region1: #{tpu_custom_call.1} parent=0
    #allocation2 [shape = 'u8[4096]{0}', space=vmem, size = 0x1000, scoped, tag = 'input window, operand 0, single buffered']
    #allocation3 [shape = 's32[1]{0}', space=sflag, size = 0x4, scoped, tag = 'scoped memory for tpu_custom_call.1']
    #allocation4 [shape = 's32[1]{0}', space=sflag, size = 0x4, scoped, tag = 'scoped memory for tpu_custom_call.1']
    #allocation5 [shape = 'u8[8192]{0}', space=vmem, size = 0x2000, scoped, tag = 'input window, operand 1, single buffered']
    #allocation6 [shape = 's32[1]{0}', space=sflag, size = 0x4, scoped, tag = 'scoped memory for tpu_custom_call.1']
    #allocation7 [shape = 'u8[16384]{0}', space=vmem, size = 0x4000, scoped, tag = 'input window, operand 3, single buffered']
    #allocation8 [shape = 'u8[16384]{0}', space=vmem, size = 0x4000, scoped, tag = 'input window, operand 5, single buffered']
    #allocation9 [shape = 's32[1]{0}', space=sflag, size = 0x4, scoped, tag = 'scoped memory for tpu_custom_call.1']
    #allocation10 [shape = 'u8[4096]{0}', space=vmem, size = 0x1000, scoped, tag = 'output window, operand 0, single buffered']
    %12 = vsyncpa [#allocation3], 0
    %13 = vsyncpa [#allocation6], 0
    %14 = vsyncpa [#allocation9], 0
    %15 = vsyncpa [#allocation4], 0
    // Predicated region
    $region2: #{tpu_custom_call.1} parent=1 // pred_check
      _
    $region3: #{tpu_custom_call.1} parent=1 // pred_check_branch
      %17 = sbr.rel (0) target = $region5
    $region4: #{tpu_custom_call.1} parent=1 // pred_region
      %19 = vsyncadd [#allocation3], 96
      %s20 = sshll.u32 %s0, 4
      %s21 = int_to_ptr.hbm [resolvable:$true] %s20
      %s22 = sshll.u32 [#allocation2], 4
      %s23 = int_to_ptr.vmem [resolvable:$true] %s22
      %28 = dma.hbm_to_vmem [thread:$0]  %s21, 32, %s23, [#allocation3], 32, 32, 2
    $region5: #{tpu_custom_call.1} parent=1 // pred_fallthru
      _
    // Predicated region
    $region6: #{tpu_custom_call.1} parent=1 // pred_check
      _
    $region7: #{tpu_custom_call.1} parent=1 // pred_check_branch
      %30 = sbr.rel (0) target = $region9
    $region8: #{tpu_custom_call.1} parent=1 // pred_region
      %32 = vsyncadd [#allocation6], 0
      %s33 = sshll.u32 %s1, 4
      %s34 = int_to_ptr.hbm [resolvable:$true] %s33
      %s35 = sshll.u32 [#allocation5], 4
      %s36 = int_to_ptr.vmem [resolvable:$true] %s35
      %41 = dma.hbm_to_vmem [thread:$0]  %s34, 256, %s36, [#allocation6], 128, 128, 8
    $region9: #{tpu_custom_call.1} parent=1 // pred_fallthru
      _
    // Predicated region
    $region10: #{tpu_custom_call.1} parent=1 // pred_check
      _
    $region11: #{tpu_custom_call.1} parent=1 // pred_check_branch
      %43 = sbr.rel (0) target = $region13
    $region12: #{tpu_custom_call.1} parent=1 // pred_region
      _
    $region13: #{tpu_custom_call.1} parent=1 // pred_fallthru
      _
    // Predicated region
    $region14: #{tpu_custom_call.1} parent=1 // pred_check
      _
    $region15: #{tpu_custom_call.1} parent=1 // pred_check_branch
      %45 = sbr.rel (0) target = $region17
    $region16: #{tpu_custom_call.1} parent=1 // pred_region
      %47 = vsyncadd [#allocation6], 0
      %s48 = sshll.u32 %s3, 4
      %s49 = int_to_ptr.hbm [resolvable:$true] %s48
      %s50 = sshll.u32 [#allocation7], 4
      %s51 = int_to_ptr.vmem [resolvable:$true] %s50
      %56 = dma.hbm_to_vmem [thread:$0]  %s49, 512, %s51, [#allocation6], 128, 128, 8
    $region17: #{tpu_custom_call.1} parent=1 // pred_fallthru
      _
    // Predicated region
    $region18: #{tpu_custom_call.1} parent=1 // pred_check
      _
    $region19: #{tpu_custom_call.1} parent=1 // pred_check_branch
      %58 = sbr.rel (0) target = $region21
    $region20: #{tpu_custom_call.1} parent=1 // pred_region
      _
    $region21: #{tpu_custom_call.1} parent=1 // pred_fallthru
      _
    // Predicated region
    $region22: #{tpu_custom_call.1} parent=1 // pred_check
      _
    $region23: #{tpu_custom_call.1} parent=1 // pred_check_branch
      %60 = sbr.rel (0) target = $region25
    $region24: #{tpu_custom_call.1} parent=1 // pred_region
      %62 = vsyncadd [#allocation9], 0
      %s63 = sshll.u32 %s5, 4
      %s64 = int_to_ptr.hbm [resolvable:$true] %s63
      %s65 = sshll.u32 [#allocation8], 4
      %s66 = int_to_ptr.vmem [resolvable:$true] %s65
      %71 = dma.hbm_to_vmem [thread:$0]  %s64, 512, %s66, [#allocation9], 128, 128, 8
    $region25: #{tpu_custom_call.1} parent=1 // pred_fallthru
      _
    // Predicated region
    $region26: #{tpu_custom_call.1} parent=1 // pred_check
      _
    $region27: #{tpu_custom_call.1} parent=1 // pred_check_branch
      %73 = sbr.rel (0) target = $region29
    $region28: #{tpu_custom_call.1} parent=1 // pred_region
      _
    $region29: #{tpu_custom_call.1} parent=1 // pred_fallthru
      _
    // Predicated region
    $region30: #{tpu_custom_call.1} parent=1 // pred_check
      _
    $region31: #{tpu_custom_call.1} parent=1 // pred_check_branch
      %75 = sbr.rel (0) target = $region33
    $region32: #{tpu_custom_call.1} parent=1 // pred_region
      %77 = dma.done [#allocation3], 128
    $region33: #{tpu_custom_call.1} parent=1 // pred_fallthru
      _
    // Predicated region
    $region34: #{tpu_custom_call.1} parent=1 // pred_check
      _
    $region35: #{tpu_custom_call.1} parent=1 // pred_check_branch
      %79 = sbr.rel (0) target = $region37
    $region36: #{tpu_custom_call.1} parent=1 // pred_region
      %81 = dma.done [#allocation6], 256
    $region37: #{tpu_custom_call.1} parent=1 // pred_fallthru
      _
    // Predicated region
    $region38: #{tpu_custom_call.1} parent=1 // pred_check
      _
    $region39: #{tpu_custom_call.1} parent=1 // pred_check_branch
      %83 = sbr.rel (0) target = $region41
    $region40: #{tpu_custom_call.1} parent=1 // pred_region
      %85 = dma.done [#allocation6], 512
    $region41: #{tpu_custom_call.1} parent=1 // pred_fallthru
      _
    // Predicated region
    $region42: #{tpu_custom_call.1} parent=1 // pred_check
      _
    $region43: #{tpu_custom_call.1} parent=1 // pred_check_branch
      %87 = sbr.rel (0) target = $region45
    $region44: #{tpu_custom_call.1} parent=1 // pred_region
      %89 = dma.done [#allocation9], 512
    $region45: #{tpu_custom_call.1} parent=1 // pred_fallthru
      _
    %v90 = vld [vmem:[#allocation2] sm:$0xff]
    %v91 = vld [vmem:[#allocation5] sm:$0xff]
    %v92 = vld [vmem:[#allocation5 + $0x8] sm:$0xff]
    %v93 = vld [vmem:[%s2] sm:$0x1]
    %v95 = vperm.slane %v93, 0
    %vm97 = vcmask 130048
    %v99 = vsel %vm97, %v90, 0
    %101 = vmatpush.msra.mxu0 0.0
    %102 = vmatpush.msra.mxu0 0.0
    %103 = vmatpush.msra.mxu0 0.0
    %104 = vmatpush.msra.mxu0 0.0
    %105 = vmatpush.msra.mxu0 0.0
    %106 = vmatpush.msra.mxu0 0.0
    %107 = vmatpush.msra.mxu0 0.0
    %108 = vmatpush.msra.mxu0 0.0
    %109 = vmatpush.msra.mxu0 0.0
    %110 = vmatpush.msra.mxu0 0.0
    %111 = vmatpush.msra.mxu0 0.0
    %112 = vmatpush.msra.mxu0 0.0
    %113 = vmatpush.msra.mxu0 0.0
    %114 = vmatpush.msra.mxu0 0.0
    %115 = vmatpush.msra.mxu0 %v92
    %116 = vmatpush.msra.mxu0 %v91
    %117 = vmatmul.f32.gmra.mxu0 %v99
    %v118 = vpop.f32.mrf.mxu0
    %v119 = vadd.f32 %v95, %v118
    %120 = vdwg.mxu0
    %v121 = vmax.f32 %v119, 0.0
    %v122 = vld [vmem:[#allocation7] sm:$0xff]
    %v123 = vld [vmem:[#allocation7 + $0x8] sm:$0xff]
    %v124 = vld [vmem:[#allocation7 + $0x10] sm:$0xff]
    %v125 = vld [vmem:[#allocation7 + $0x18] sm:$0xff]
    %v126 = vld [vmem:[%s4] sm:$0x1]
    %v128 = vperm.slane %v126, 0
    %vm130 = vcmask 261120
    %v132 = vsel %vm130, %v121, 0
    %134 = vmatpush.msra.mxu0 0.0
    %135 = vmatpush.msra.mxu0 0.0
    %136 = vmatpush.msra.mxu0 0.0
    %137 = vmatpush.msra.mxu0 0.0
    %138 = vmatpush.msra.mxu0 0.0
    %139 = vmatpush.msra.mxu0 0.0
    %140 = vmatpush.msra.mxu0 0.0
    %141 = vmatpush.msra.mxu0 0.0
    %142 = vmatpush.msra.mxu0 0.0
    %143 = vmatpush.msra.mxu0 0.0
    %144 = vmatpush.msra.mxu0 0.0
    %145 = vmatpush.msra.mxu0 0.0
    %146 = vmatpush.msra.mxu0 %v125
    %147 = vmatpush.msra.mxu0 %v124
    %148 = vmatpush.msra.mxu0 %v123
    %149 = vmatpush.msra.mxu0 %v122
    %150 = vmatmul.f32.gmra.mxu0 %v132
    %v151 = vpop.f32.mrf.mxu0
    %v152 = vadd.f32 %v128, %v151
    %153 = vdwg.mxu0
    %v154 = vmax.f32 %v152, 0.0
    %v155 = vld [vmem:[#allocation8] sm:$0xff]
    %v156 = vld [vmem:[#allocation8 + $0x8] sm:$0xff]
    %v157 = vld [vmem:[#allocation8 + $0x10] sm:$0xff]
    %v158 = vld [vmem:[#allocation8 + $0x18] sm:$0xff]
    %v159 = vld [vmem:[%s6] sm:$0x1]
    %v161 = vperm.slane %v159, 0
    %v164 = vsel %vm130, %v154, 0
    %166 = vmatpush.msra.mxu0 0.0
    %167 = vmatpush.msra.mxu0 0.0
    %168 = vmatpush.msra.mxu0 0.0
    %169 = vmatpush.msra.mxu0 0.0
    %170 = vmatpush.msra.mxu0 0.0
    %171 = vmatpush.msra.mxu0 0.0
    %172 = vmatpush.msra.mxu0 0.0
    %173 = vmatpush.msra.mxu0 0.0
    %174 = vmatpush.msra.mxu0 0.0
    %175 = vmatpush.msra.mxu0 0.0
    %176 = vmatpush.msra.mxu0 0.0
    %177 = vmatpush.msra.mxu0 0.0
    %178 = vmatpush.msra.mxu0 %v158
    %179 = vmatpush.msra.mxu0 %v157
    %180 = vmatpush.msra.mxu0 %v156
    %181 = vmatpush.msra.mxu0 %v155
    %182 = vmatmul.f32.gmra.mxu0 %v164
    %v183 = vpop.f32.mrf.mxu0
    %v184 = vadd.f32 %v161, %v183
    %185 = vdwg.mxu0
    %186 = vrot.lane.b32.xlu0 %v184, 8
    %v187 = vpop.permute.xlu0 %186
    %v188 = vmax.f32 %v184, %v187
    %189 = vrot.lane.b32.xlu0 %v188, 16
    %v190 = vpop.permute.xlu0 %189
    %v191 = vmax.f32 %v188, %v190
    %192 = vrot.lane.b32.xlu0 %v191, 32
    %v193 = vpop.permute.xlu0 %192
    %v194 = vmax.f32 %v191, %v193
    %195 = vrot.lane.b32.xlu0 %v194, 64
    %v196 = vpop.permute.xlu0 %195
    %v197 = vmax.f32 %v194, %v196
    %v198 = vsub.f32 %v184, %v197
    %v199 = vmul.f32 %v198, 1.442695
    %v200 = vpow.pop %v199
    %201 = vrot.lane.b32.xlu0 %v200, 8
    %v202 = vpop.permute.xlu0 %201
    %v203 = vadd.f32 %v200, %v202
    %204 = vrot.lane.b32.xlu0 %v203, 16
    %v205 = vpop.permute.xlu0 %204
    %v206 = vadd.f32 %v203, %v205
    %207 = vrot.lane.b32.xlu0 %v206, 32
    %v208 = vpop.permute.xlu0 %207
    %v209 = vadd.f32 %v206, %v208
    %210 = vrot.lane.b32.xlu0 %v209, 64
    %v211 = vpop.permute.xlu0 %210
    %v212 = vadd.f32 %v209, %v211
    %v213 = vrcp.pop %v212
    %v214 = vmul.f32 %v212, %v213
    %v215 = vsub.f32 2.0, %v214
    %v216 = vmul.f32 %v213, %v215
    %v217 = vmul.f32 %v200, %v216
    %218 = vst [vmem:[#allocation10] sm:$0xff] %v217
    // Predicated region
    $region46: #{tpu_custom_call.1} parent=1 // pred_check
      _
    $region47: #{tpu_custom_call.1} parent=1 // pred_check_branch
      %220 = sbr.rel (0) target = $region49
    $region48: #{tpu_custom_call.1} parent=1 // pred_region
      %222 = vsyncadd [#allocation4], 96
      %s223 = sshll.u32 [#allocation10], 4
      %s224 = int_to_ptr.vmem [resolvable:$true] %s223
      %s225 = sshll.u32 %s7, 4
      %s226 = int_to_ptr.hbm [resolvable:$true] %s225
      %231 = dma.vmem_to_hbm [thread:$0]  %s224, 32, %s226, [#allocation4], 32, 32, 2
    $region49: #{tpu_custom_call.1} parent=1 // pred_fallthru
      _
    // Predicated region
    $region50: #{tpu_custom_call.1} parent=1 // pred_check
      _
    $region51: #{tpu_custom_call.1} parent=1 // pred_check_branch
      %233 = sbr.rel (0) target = $region53
    $region52: #{tpu_custom_call.1} parent=1 // pred_region
      %235 = dma.done [#allocation4], 128
    $region53: #{tpu_custom_call.1} parent=1 // pred_fallthru
      _
    %236 = vsyncpa [#allocation3], 1
    %237 = vsyncpa [#allocation6], 1
    %238 = vsyncpa [#allocation9], 1
    %239 = vsyncpa [#allocation4], 1

// kernel: tpu_custom_call.1
$region0: #{tpu_custom_call.1}
  #allocation0 [shape = 'u32[]', space=smem, size = 0x4, offset = 0x4, fixed_abs, tag = 'smem constant byte address 0x4 - core index']
  #allocation1 [shape = 'u32[72,128]{1,0:T(1,128)}', space=vmem, size = 0x9000, scoped, tag = 'internal scratch']
  %s0 = inlined_call_operand.hbm [shape: f32[2,16], index: 0, kind: input, shape index: {}]
  %s1 = inlined_call_operand.hbm [shape: f32[16,32], index: 1, kind: input, shape index: {}]
  %s2 = inlined_call_operand.vmem [shape: f32[1,32], index: 2, kind: input, shape index: {}]
  %s3 = inlined_call_operand.hbm [shape: f32[32,32], index: 3, kind: input, shape index: {}]
  %s4 = inlined_call_operand.vmem [shape: f32[1,32], index: 4, kind: input, shape index: {}]
  %s5 = inlined_call_operand.hbm [shape: f32[32,128], index: 5, kind: input, shape index: {}]
  %s6 = inlined_call_operand.vmem [shape: f32[1,128], index: 6, kind: input, shape index: {}]
  %s7 = inlined_call_operand.hbm [shape: f32[2,128], index: 7, kind: output, shape index: {}]
  %s8 = sld [smem:[#allocation0]]
  $region54: #{tpu_custom_call.1} parent=0
    _
  %s10 = ssub.s32 1, %s8
  %s11 = scalar_select 0, %s10, %s8
  $region1: #{tpu_custom_call.1} parent=0
    #allocation2 [shape = 'u8[4096]{0}', space=vmem, size = 0x1000, scoped, tag = 'input window, operand 0, single buffered']
    #allocation3 [shape = 's32[1]{0}', space=sflag, size = 0x4, scoped, tag = 'scoped memory for tpu_custom_call.1']
    #allocation4 [shape = 's32[1]{0}', space=sflag, size = 0x4, scoped, tag = 'scoped memory for tpu_custom_call.1']
    #allocation5 [shape = 'u8[8192]{0}', space=vmem, size = 0x2000, scoped, tag = 'input window, operand 1, single buffered']
    #allocation6 [shape = 's32[1]{0}', space=sflag, size = 0x4, scoped, tag = 'scoped memory for tpu_custom_call.1']
    #allocation7 [shape = 'u8[16384]{0}', space=vmem, size = 0x4000, scoped, tag = 'input window, operand 3, single buffered']
    #allocation8 [shape = 'u8[16384]{0}', space=vmem, size = 0x4000, scoped, tag = 'input window, operand 5, single buffered']
    #allocation9 [shape = 's32[1]{0}', space=sflag, size = 0x4, scoped, tag = 'scoped memory for tpu_custom_call.1']
    #allocation10 [shape = 'u8[4096]{0}', space=vmem, size = 0x1000, scoped, tag = 'output window, operand 0, single buffered']
    %12 = vsyncpa [#allocation3], 0
    %13 = vsyncpa [#allocation6], 0
    %14 = vsyncpa [#allocation9], 0
    %15 = vsyncpa [#allocation4], 0
    // Predicated region
    $region2: #{tpu_custom_call.1} parent=1 // pred_check
      _
    $region3: #{tpu_custom_call.1} parent=1 // pred_check_branch
      %17 = sbr.rel (0) target = $region5
    $region4: #{tpu_custom_call.1} parent=1 // pred_region
      %19 = vsyncadd [#allocation3], 96
      %s20 = sshll.u32 %s0, 4
      %s21 = int_to_ptr.hbm [resolvable:$true] %s20
      %s22 = sshll.u32 [#allocation2], 4
      %s23 = int_to_ptr.vmem [resolvable:$true] %s22
      %28 = dma.hbm_to_vmem [thread:$0]  %s21, 32, %s23, [#allocation3], 32, 32, 2
    $region5: #{tpu_custom_call.1} parent=1 // pred_fallthru
      _
    // Predicated region
    $region6: #{tpu_custom_call.1} parent=1 // pred_check
      _
    $region7: #{tpu_custom_call.1} parent=1 // pred_check_branch
      %30 = sbr.rel (0) target = $region9
    $region8: #{tpu_custom_call.1} parent=1 // pred_region
      %32 = vsyncadd [#allocation6], 0
      %s33 = sshll.u32 %s1, 4
      %s34 = int_to_ptr.hbm [resolvable:$true] %s33
      %s35 = sshll.u32 [#allocation5], 4
      %s36 = int_to_ptr.vmem [resolvable:$true] %s35
      %41 = dma.hbm_to_vmem [thread:$0]  %s34, 256, %s36, [#allocation6], 128, 128, 8
    $region9: #{tpu_custom_call.1} parent=1 // pred_fallthru
      _
    // Predicated region
    $region10: #{tpu_custom_call.1} parent=1 // pred_check
      _
    $region11: #{tpu_custom_call.1} parent=1 // pred_check_branch
      %43 = sbr.rel (0) target = $region13
    $region12: #{tpu_custom_call.1} parent=1 // pred_region
      _
    $region13: #{tpu_custom_call.1} parent=1 // pred_fallthru
      _
    // Predicated region
    $region14: #{tpu_custom_call.1} parent=1 // pred_check
      _
    $region15: #{tpu_custom_call.1} parent=1 // pred_check_branch
      %45 = sbr.rel (0) target = $region17
    $region16: #{tpu_custom_call.1} parent=1 // pred_region
      %47 = vsyncadd [#allocation6], 0
      %s48 = sshll.u32 %s3, 4
      %s49 = int_to_ptr.hbm [resolvable:$true] %s48
      %s50 = sshll.u32 [#allocation7], 4
      %s51 = int_to_ptr.vmem [resolvable:$true] %s50
      %56 = dma.hbm_to_vmem [thread:$0]  %s49, 512, %s51, [#allocation6], 128, 128, 8
    $region17: #{tpu_custom_call.1} parent=1 // pred_fallthru
      _
    // Predicated region
    $region18: #{tpu_custom_call.1} parent=1 // pred_check
      _
    $region19: #{tpu_custom_call.1} parent=1 // pred_check_branch
      %58 = sbr.rel (0) target = $region21
    $region20: #{tpu_custom_call.1} parent=1 // pred_region
      _
    $region21: #{tpu_custom_call.1} parent=1 // pred_fallthru
      _
    // Predicated region
    $region22: #{tpu_custom_call.1} parent=1 // pred_check
      _
    $region23: #{tpu_custom_call.1} parent=1 // pred_check_branch
      %60 = sbr.rel (0) target = $region25
    $region24: #{tpu_custom_call.1} parent=1 // pred_region
      %62 = vsyncadd [#allocation9], 0
      %s63 = sshll.u32 %s5, 4
      %s64 = int_to_ptr.hbm [resolvable:$true] %s63
      %s65 = sshll.u32 [#allocation8], 4
      %s66 = int_to_ptr.vmem [resolvable:$true] %s65
      %71 = dma.hbm_to_vmem [thread:$0]  %s64, 512, %s66, [#allocation9], 128, 128, 8
    $region25: #{tpu_custom_call.1} parent=1 // pred_fallthru
      _
    // Predicated region
    $region26: #{tpu_custom_call.1} parent=1 // pred_check
      _
    $region27: #{tpu_custom_call.1} parent=1 // pred_check_branch
      %73 = sbr.rel (0) target = $region29
    $region28: #{tpu_custom_call.1} parent=1 // pred_region
      _
    $region29: #{tpu_custom_call.1} parent=1 // pred_fallthru
      _
    // Predicated region
    $region30: #{tpu_custom_call.1} parent=1 // pred_check
      _
    $region31: #{tpu_custom_call.1} parent=1 // pred_check_branch
      %75 = sbr.rel (0) target = $region33
    $region32: #{tpu_custom_call.1} parent=1 // pred_region
      %77 = dma.done [#allocation3], 128
    $region33: #{tpu_custom_call.1} parent=1 // pred_fallthru
      _
    // Predicated region
    $region34: #{tpu_custom_call.1} parent=1 // pred_check
      _
    $region35: #{tpu_custom_call.1} parent=1 // pred_check_branch
      %79 = sbr.rel (0) target = $region37
    $region36: #{tpu_custom_call.1} parent=1 // pred_region
      %81 = dma.done [#allocation6], 256
    $region37: #{tpu_custom_call.1} parent=1 // pred_fallthru
      _
    // Predicated region
    $region38: #{tpu_custom_call.1} parent=1 // pred_check
      _
    $region39: #{tpu_custom_call.1} parent=1 // pred_check_branch
      %83 = sbr.rel (0) target = $region41
    $region40: #{tpu_custom_call.1} parent=1 // pred_region
      %85 = dma.done [#allocation6], 512
    $region41: #{tpu_custom_call.1} parent=1 // pred_fallthru
      _
    // Predicated region
    $region42: #{tpu_custom_call.1} parent=1 // pred_check
      _
    $region43: #{tpu_custom_call.1} parent=1 // pred_check_branch
      %87 = sbr.rel (0) target = $region45
    $region44: #{tpu_custom_call.1} parent=1 // pred_region
      %89 = dma.done [#allocation9], 512
    $region45: #{tpu_custom_call.1} parent=1 // pred_fallthru
      _
    %v90 = vld [vmem:[#allocation2] sm:$0xff]
    %v91 = vld [vmem:[#allocation5] sm:$0xff]
    %v92 = vld [vmem:[#allocation5 + $0x8] sm:$0xff]
    %v93 = vld [vmem:[%s2] sm:$0x1]
    %v95 = vperm.slane %v93, 0
    %vm97 = vcmask 130048
    %v99 = vsel %vm97, %v90, 0
    %101 = vmatpush.msra.mxu0 0.0
    %102 = vmatpush.msra.mxu0 0.0
    %103 = vmatpush.msra.mxu0 0.0
    %104 = vmatpush.msra.mxu0 0.0
    %105 = vmatpush.msra.mxu0 0.0
    %106 = vmatpush.msra.mxu0 0.0
    %107 = vmatpush.msra.mxu0 0.0
    %108 = vmatpush.msra.mxu0 0.0
    %109 = vmatpush.msra.mxu0 0.0
    %110 = vmatpush.msra.mxu0 0.0
    %111 = vmatpush.msra.mxu0 0.0
    %112 = vmatpush.msra.mxu0 0.0
    %113 = vmatpush.msra.mxu0 0.0
    %114 = vmatpush.msra.mxu0 0.0
    %115 = vmatpush.msra.mxu0 %v92
    %116 = vmatpush.msra.mxu0 %v91
    %117 = vmatmul.f32.gmra.mxu0 %v99
    %v118 = vpop.f32.mrf.mxu0
    %v119 = vadd.f32 %v95, %v118
    %120 = vdwg.mxu0
    %v121 = vmax.f32 %v119, 0.0
    %v122 = vld [vmem:[#allocation7] sm:$0xff]
    %v123 = vld [vmem:[#allocation7 + $0x8] sm:$0xff]
    %v124 = vld [vmem:[#allocation7 + $0x10] sm:$0xff]
    %v125 = vld [vmem:[#allocation7 + $0x18] sm:$0xff]
    %v126 = vld [vmem:[%s4] sm:$0x1]
    %v128 = vperm.slane %v126, 0
    %vm130 = vcmask 261120
    %v132 = vsel %vm130, %v121, 0
    %134 = vmatpush.msra.mxu0 0.0
    %135 = vmatpush.msra.mxu0 0.0
    %136 = vmatpush.msra.mxu0 0.0
    %137 = vmatpush.msra.mxu0 0.0
    %138 = vmatpush.msra.mxu0 0.0
    %139 = vmatpush.msra.mxu0 0.0
    %140 = vmatpush.msra.mxu0 0.0
    %141 = vmatpush.msra.mxu0 0.0
    %142 = vmatpush.msra.mxu0 0.0
    %143 = vmatpush.msra.mxu0 0.0
    %144 = vmatpush.msra.mxu0 0.0
    %145 = vmatpush.msra.mxu0 0.0
    %146 = vmatpush.msra.mxu0 %v125
    %147 = vmatpush.msra.mxu0 %v124
    %148 = vmatpush.msra.mxu0 %v123
    %149 = vmatpush.msra.mxu0 %v122
    %150 = vmatmul.f32.gmra.mxu0 %v132
    %v151 = vpop.f32.mrf.mxu0
    %v152 = vadd.f32 %v128, %v151
    %153 = vdwg.mxu0
    %v154 = vmax.f32 %v152, 0.0
    %v155 = vld [vmem:[#allocation8] sm:$0xff]
    %v156 = vld [vmem:[#allocation8 + $0x8] sm:$0xff]
    %v157 = vld [vmem:[#allocation8 + $0x10] sm:$0xff]
    %v158 = vld [vmem:[#allocation8 + $0x18] sm:$0xff]
    %v159 = vld [vmem:[%s6] sm:$0x1]
    %v161 = vperm.slane %v159, 0
    %v164 = vsel %vm130, %v154, 0
    %166 = vmatpush.msra.mxu0 0.0
    %167 = vmatpush.msra.mxu0 0.0
    %168 = vmatpush.msra.mxu0 0.0
    %169 = vmatpush.msra.mxu0 0.0
    %170 = vmatpush.msra.mxu0 0.0
    %171 = vmatpush.msra.mxu0 0.0
    %172 = vmatpush.msra.mxu0 0.0
    %173 = vmatpush.msra.mxu0 0.0
    %174 = vmatpush.msra.mxu0 0.0
    %175 = vmatpush.msra.mxu0 0.0
    %176 = vmatpush.msra.mxu0 0.0
    %177 = vmatpush.msra.mxu0 0.0
    %178 = vmatpush.msra.mxu0 %v158
    %179 = vmatpush.msra.mxu0 %v157
    %180 = vmatpush.msra.mxu0 %v156
    %181 = vmatpush.msra.mxu0 %v155
    %182 = vmatmul.f32.gmra.mxu0 %v164
    %v183 = vpop.f32.mrf.mxu0
    %v184 = vadd.f32 %v161, %v183
    %185 = vdwg.mxu0
    %186 = vrot.lane.b32.xlu0 %v184, 8
    %v187 = vpop.permute.xlu0 %186
    %v188 = vmax.f32 %v184, %v187
    %189 = vrot.lane.b32.xlu0 %v188, 16
    %v190 = vpop.permute.xlu0 %189
    %v191 = vmax.f32 %v188, %v190
    %192 = vrot.lane.b32.xlu0 %v191, 32
    %v193 = vpop.permute.xlu0 %192
    %v194 = vmax.f32 %v191, %v193
    %195 = vrot.lane.b32.xlu0 %v194, 64
    %v196 = vpop.permute.xlu0 %195
    %v197 = vmax.f32 %v194, %v196
    %v198 = vsub.f32 %v184, %v197
    %v199 = vmul.f32 %v198, 1.442695
    %v200 = vpow.pop %v199
    %201 = vrot.lane.b32.xlu0 %v200, 8
    %v202 = vpop.permute.xlu0 %201
    %v203 = vadd.f32 %v200, %v202
    %204 = vrot.lane.b32.xlu0 %v203, 16
    %v205 = vpop.permute.xlu0 %204
    %v206 = vadd.f32 %v203, %v205
    %207 = vrot.lane.b32.xlu0 %v206, 32
    %v208 = vpop.permute.xlu0 %207
    %v209 = vadd.f32 %v206, %v208
    %210 = vrot.lane.b32.xlu0 %v209, 64
    %v211 = vpop.permute.xlu0 %210
    %v212 = vadd.f32 %v209, %v211
    %v213 = vrcp.pop %v212
    %v214 = vmul.f32 %v212, %v213
    %v215 = vsub.f32 2.0, %v214
    %v216 = vmul.f32 %v213, %v215
    %v217 = vmul.f32 %v200, %v216
    %218 = vst [vmem:[#allocation10] sm:$0xff] %v217
    // Predicated region
    $region46: #{tpu_custom_call.1} parent=1 // pred_check
      _
    $region47: #{tpu_custom_call.1} parent=1 // pred_check_branch
      %220 = sbr.rel (0) target = $region49
    $region48: #{tpu_custom_call.1} parent=1 // pred_region
      %222 = vsyncadd [#allocation4], 96
      %s223 = sshll.u32 [#allocation10], 4
      %s224 = int_to_ptr.vmem [resolvable:$true] %s223
      %s225 = sshll.u32 %s7, 4
      %s226 = int_to_ptr.hbm [resolvable:$true] %s225
      %231 = dma.vmem_to_hbm [thread:$0]  %s224, 32, %s226, [#allocation4], 32, 32, 2
    $region49: #{tpu_custom_call.1} parent=1 // pred_fallthru
      _
    // Predicated region
    $region50: #{tpu_custom_call.1} parent=1 // pred_check
      _
    $region51: #{tpu_custom_call.1} parent=1 // pred_check_branch
      %233 = sbr.rel (0) target = $region53
    $region52: #{tpu_custom_call.1} parent=1 // pred_region
      %235 = dma.done [#allocation4], 128
    $region53: #{tpu_custom_call.1} parent=1 // pred_fallthru
      _
    %236 = vsyncpa [#allocation3], 1
    %237 = vsyncpa [#allocation6], 1
    %238 = vsyncpa [#allocation9], 1
    %239 = vsyncpa [#allocation4], 1

</llo_original>
